<compile_context>
chip_gen: v6e
topology: v6e:2x2x1
jax: 0.10.0
libtpu: 0.0.40
codegen_flags: <defaults>
</compile_context>

<pallas_src>
import jax
import jax.numpy as jnp
from jax.experimental import pallas as pl
from jax.experimental.pallas import tpu as pltpu


def _location_scale_kernel(x_ref, m_ref, inv_s_ref, o_ref):
    # x_ref: (tb, p), m_ref/inv_s_ref: (K, p) f32, o_ref: (tb, K*p)
    K, p = m_ref.shape
    xf = x_ref[...].astype(jnp.float32)          # (tb, p)
    m = m_ref[...]                               # (K, p)
    inv_s = inv_s_ref[...]                       # (K, p)
    # Statically unrolled over K: each iteration is one full (tb, p) lane-slice
    # store into the (tb, K*p) output block -- unmasked, lane/sublane dense.
    for k in range(K):
        yk = (xf - m[k:k + 1, :]) * inv_s[k:k + 1, :]          # (tb, p) f32
        o_ref[:, k * p:(k + 1) * p] = yk.astype(o_ref.dtype)


def _pick_tb(B, K, p, itemsize, sub):
    """Rows of x per grid step."""
    out_row_bytes = K * p * itemsize
    # ~6 MiB of output per step: amortizes the ~0.35us per-step overhead and
    # reaches the HBM roofline, while double-buffered blocks stay well under
    # the 32 MiB scoped-VMEM limit on every generation (v5e/v6e/v7x).
    target = max(sub, (6 << 20) // max(1, out_row_bytes))
    # For large problems keep >= 4 grid steps: 2 TensorCores (v7x) x >= 2
    # pipeline stages each, so DMA prefetch/writeback overlaps compute.
    if B * out_row_bytes >= (8 << 20):
        target = min(target, pl.cdiv(B, 4))
    target = max(sub, (target // sub) * sub)     # sublane-packing aligned
    if B <= target:
        return B                                 # single full-array block
    # Prefer a tile that divides B exactly -> no ragged last step at all.
    tb = target
    while tb >= max(sub, target - 16 * sub):
        if B % tb == 0:
            return tb
        tb -= sub
    return target                                # ragged last tile (Pallas masks OOB rows)


def location_scale_forward(x, m, log_s, *, tb=None):
    """LocationScale.forward: x [..., p] -> [..., K, p] = (x - m) / exp(log_s)."""
    K, p = m.shape
    lead = x.shape[:-1]
    x2 = x.reshape(-1, p)                        # (B, p)
    B = x2.shape[0]
    itemsize = x2.dtype.itemsize
    sub = max(8, 32 // itemsize)                 # f32 -> 8, bf16 -> 16, int8 -> 32

    if tb is None:
        tb = _pick_tb(B, K, p, itemsize, sub)
    else:
        tb = max(sub, ((tb + sub - 1) // sub) * sub)
        if tb >= B:
            tb = B                               # full-array block (no alignment needed)
    n_tiles = pl.cdiv(B, tb)

    # Hoist exp(-log_s) out of the kernel: K*p is tiny, computed once by XLA.
    # Params stay in f32; the kernel computes in f32 and stores in x.dtype.
    m_f = m.astype(jnp.float32)
    inv_s = jnp.exp(-log_s).astype(jnp.float32)

    # VMEM budget from actual need: double-buffered x/out blocks + resident
    # params + headroom, capped at the v7x scoped default (32 MiB).
    block_bytes = (tb * p + tb * K * p) * itemsize + 2 * K * p * 4
    vmem_limit = int(min(max(2 * block_bytes + (1 << 20), 4 << 20), 32 << 20))

    out = pl.pallas_call(
        _location_scale_kernel,
        out_shape=jax.ShapeDtypeStruct((B, K * p), x2.dtype),
        grid_spec=pltpu.PrefetchScalarGridSpec(
            num_scalar_prefetch=0,
            grid=(n_tiles,),
            in_specs=[
                pl.BlockSpec((tb, p), lambda i: (i, 0)),   # x tile
                pl.BlockSpec((K, p), lambda i: (0, 0)),    # m (resident across grid)
                pl.BlockSpec((K, p), lambda i: (0, 0)),    # inv_s (resident)
            ],
            out_specs=pl.BlockSpec((tb, K * p), lambda i: (i, 0)),
        ),
        compiler_params=pltpu.CompilerParams(
            dimension_semantics=("parallel",),             # batch shards across TCs
            vmem_limit_bytes=vmem_limit,
        ),
    )(x2, m_f, inv_s)

    # Row-major (B, K*p) == (B, K, p): reshape back to [..., K, p].
    return out.reshape(*lead, K, p)


if __name__ == "__main__":
    key = jax.random.PRNGKey(0)
    k_m, k_ls, k_x = jax.random.split(key, 3)

    # Module hyperparameters (small, consistent with the forward pass)
    K = 4
    p = 128

    # Parameters mirroring nn.Parameter(torch.randn(K, p)) / torch.zeros(K, p)
    # (log_s gets small random values so the division is actually exercised).
    m = jax.random.normal(k_m, (K, p), dtype=jnp.float32)
    log_s = 0.1 * jax.random.normal(k_ls, (K, p), dtype=jnp.float32)

    # Example input: leading dims (5, 8) -> B = 40 flattened rows
    x = jax.random.normal(k_x, (5, 8, p), dtype=jnp.float32)

    ref = (x[..., None, :] - m) / jnp.exp(log_s)

    # 1) default tile selection (single full-array block for this small B)
    out = jax.block_until_ready(location_scale_forward(x, m, log_s))
    assert out.shape == (5, 8, K, p)
    assert jnp.allclose(out, ref, atol=1e-5, rtol=1e-5)

    # 2) forced small tile that divides B exactly: 5-step grid, no ragged tile
    out2 = jax.block_until_ready(location_scale_forward(x, m, log_s, tb=8))
    assert out2.shape == (5, 8, K, p)
    assert jnp.allclose(out2, ref, atol=1e-5, rtol=1e-5)

    # 3) forced tile that does NOT divide B: 3-step grid with a ragged last
    #    tile (rows 40..47 out-of-bounds, masked by Pallas on writeback)
    out3 = jax.block_until_ready(location_scale_forward(x, m, log_s, tb=16))
    assert out3.shape == (5, 8, K, p)
    assert jnp.allclose(out3, ref, atol=1e-5, rtol=1e-5)

    print("KERNEL_OK")
</pallas_src>

<mosaic_0001>
module attributes {stable_mosaic.version = 11 : i64} {
  func.func @_location_scale_kernel(%arg0: i32, %arg1: memref<40x128xf32, #tpu.memory_space<vmem>>, %arg2: memref<4x128xf32, #tpu.memory_space<vmem>>, %arg3: memref<4x128xf32, #tpu.memory_space<vmem>>, %arg4: memref<40x512xf32, #tpu.memory_space<vmem>>) attributes {dimension_semantics = [#tpu.dimension_semantics<parallel>], iteration_bounds = array<i64: 1>, scalar_prefetch = 0 : i64, scratch_operands = 0 : i64, tpu.core_type = #tpu.core_type<tc>, window_params = [{transform_indices = @transform_0, window_bounds = array<i64: 40, 128>}, {pipeline_mode = #tpu.pipeline_mode<synchronous>, transform_indices = @transform_1, window_bounds = array<i64: 4, 128>}, {pipeline_mode = #tpu.pipeline_mode<synchronous>, transform_indices = @transform_2, window_bounds = array<i64: 4, 128>}, {transform_indices = @transform_3, window_bounds = array<i64: 40, 512>}]} {
    %c0 = arith.constant 0 : index
    %c0_0 = arith.constant 0 : index
    %0 = vector.load %arg1[%c0, %c0_0] : memref<40x128xf32, #tpu.memory_space<vmem>>, vector<40x128xf32>
    %c0_1 = arith.constant 0 : index
    %c0_2 = arith.constant 0 : index
    %1 = vector.load %arg2[%c0_1, %c0_2] : memref<4x128xf32, #tpu.memory_space<vmem>>, vector<4x128xf32>
    %c0_3 = arith.constant 0 : index
    %c0_4 = arith.constant 0 : index
    %2 = vector.load %arg3[%c0_3, %c0_4] : memref<4x128xf32, #tpu.memory_space<vmem>>, vector<4x128xf32>
    %3 = vector.extract_strided_slice %1 {offsets = [0, 0], sizes = [1, 128], strides = [1, 1]} : vector<4x128xf32> to vector<1x128xf32>
    %4 = vector.broadcast %3 : vector<1x128xf32> to vector<40x128xf32>
    %5 = arith.subf %0, %4 : vector<40x128xf32>
    %6 = vector.extract_strided_slice %2 {offsets = [0, 0], sizes = [1, 128], strides = [1, 1]} : vector<4x128xf32> to vector<1x128xf32>
    %7 = vector.broadcast %6 : vector<1x128xf32> to vector<40x128xf32>
    %8 = arith.mulf %5, %7 : vector<40x128xf32>
    %c0_5 = arith.constant 0 : index
    %c0_6 = arith.constant 0 : index
    %9 = vector.load %arg4[%c0_5, %c0_6] : memref<40x512xf32, #tpu.memory_space<vmem>>, vector<40x128xf32>
    tpu.vector_store %arg4[%c0_5, %c0_6], %8 {strides = array<i32>} : memref<40x512xf32, #tpu.memory_space<vmem>>, vector<40x128xf32>,
    %10 = vector.extract_strided_slice %1 {offsets = [1, 0], sizes = [1, 128], strides = [1, 1]} : vector<4x128xf32> to vector<1x128xf32>
    %11 = vector.broadcast %10 : vector<1x128xf32> to vector<40x128xf32>
    %12 = arith.subf %0, %11 : vector<40x128xf32>
    %13 = vector.extract_strided_slice %2 {offsets = [1, 0], sizes = [1, 128], strides = [1, 1]} : vector<4x128xf32> to vector<1x128xf32>
    %14 = vector.broadcast %13 : vector<1x128xf32> to vector<40x128xf32>
    %15 = arith.mulf %12, %14 : vector<40x128xf32>
    %c0_7 = arith.constant 0 : index
    %c128 = arith.constant 128 : index
    %16 = vector.load %arg4[%c0_7, %c128] : memref<40x512xf32, #tpu.memory_space<vmem>>, vector<40x128xf32>
    tpu.vector_store %arg4[%c0_7, %c128], %15 {strides = array<i32>} : memref<40x512xf32, #tpu.memory_space<vmem>>, vector<40x128xf32>,
    %17 = vector.extract_strided_slice %1 {offsets = [2, 0], sizes = [1, 128], strides = [1, 1]} : vector<4x128xf32> to vector<1x128xf32>
    %18 = vector.broadcast %17 : vector<1x128xf32> to vector<40x128xf32>
    %19 = arith.subf %0, %18 : vector<40x128xf32>
    %20 = vector.extract_strided_slice %2 {offsets = [2, 0], sizes = [1, 128], strides = [1, 1]} : vector<4x128xf32> to vector<1x128xf32>
    %21 = vector.broadcast %20 : vector<1x128xf32> to vector<40x128xf32>
    %22 = arith.mulf %19, %21 : vector<40x128xf32>
    %c0_8 = arith.constant 0 : index
    %c256 = arith.constant 256 : index
    %23 = vector.load %arg4[%c0_8, %c256] : memref<40x512xf32, #tpu.memory_space<vmem>>, vector<40x128xf32>
    tpu.vector_store %arg4[%c0_8, %c256], %22 {strides = array<i32>} : memref<40x512xf32, #tpu.memory_space<vmem>>, vector<40x128xf32>,
    %24 = vector.extract_strided_slice %1 {offsets = [3, 0], sizes = [1, 128], strides = [1, 1]} : vector<4x128xf32> to vector<1x128xf32>
    %25 = vector.broadcast %24 : vector<1x128xf32> to vector<40x128xf32>
    %26 = arith.subf %0, %25 : vector<40x128xf32>
    %27 = vector.extract_strided_slice %2 {offsets = [3, 0], sizes = [1, 128], strides = [1, 1]} : vector<4x128xf32> to vector<1x128xf32>
    %28 = vector.broadcast %27 : vector<1x128xf32> to vector<40x128xf32>
    %29 = arith.mulf %26, %28 : vector<40x128xf32>
    %c0_9 = arith.constant 0 : index
    %c384 = arith.constant 384 : index
    %30 = vector.load %arg4[%c0_9, %c384] : memref<40x512xf32, #tpu.memory_space<vmem>>, vector<40x128xf32>
    tpu.vector_store %arg4[%c0_9, %c384], %29 {strides = array<i32>} : memref<40x512xf32, #tpu.memory_space<vmem>>, vector<40x128xf32>,
    return
  }
  func.func @transform_0(%arg0: i32) -> (i32, i32) {
    %c0_i32 = arith.constant 0 : i32
    %c0_i32_0 = arith.constant 0 : i32
    return %arg0, %c0_i32 : i32, i32
  }
  func.func @transform_1(%arg0: i32) -> (i32, i32) {
    %c0_i32 = arith.constant 0 : i32
    %c0_i32_0 = arith.constant 0 : i32
    %c0_i32_1 = arith.constant 0 : i32
    return %c0_i32, %c0_i32_0 : i32, i32
  }
  func.func @transform_2(%arg0: i32) -> (i32, i32) {
    %c0_i32 = arith.constant 0 : i32
    %c0_i32_0 = arith.constant 0 : i32
    %c0_i32_1 = arith.constant 0 : i32
    return %c0_i32, %c0_i32_0 : i32, i32
  }
  func.func @transform_3(%arg0: i32) -> (i32, i32) {
    %c0_i32 = arith.constant 0 : i32
    %c0_i32_0 = arith.constant 0 : i32
    return %arg0, %c0_i32 : i32, i32
  }
}

</mosaic_0001>

<llo_original>
// kernel: tpu_custom_call.1
$region0: #{tpu_custom_call.1}
  #allocation0 [shape = 'u32[]', space=smem, size = 0x4, offset = 0x4, fixed_abs, tag = 'smem constant byte address 0x4 - core index']
  #allocation1 [shape = 'u32[144,128]{1,0:T(1,128)}', space=vmem, size = 0x12000, scoped, tag = 'internal scratch']
  %s0 = inlined_call_operand.hbm [shape: f32[40,128], index: 0, kind: input, shape index: {}]
  %s1 = inlined_call_operand.hbm [shape: f32[4,128], index: 1, kind: input, shape index: {}]
  %s2 = inlined_call_operand.hbm [shape: f32[4,128], index: 2, kind: input, shape index: {}]
  %s3 = inlined_call_operand.hbm [shape: f32[40,512], index: 3, kind: output, shape index: {}]
  %s4 = sld [smem:[#allocation0]]
  $region34: #{tpu_custom_call.1} parent=0
    _
  %s6 = ssub.s32 1, %s4
  %s7 = scalar_select 0, %s6, %s4
  $region1: #{tpu_custom_call.1} parent=0
    #allocation2 [shape = 'u8[20480]{0}', space=vmem, size = 0x5000, scoped, tag = 'input window, operand 0, single buffered']
    #allocation3 [shape = 's32[1]{0}', space=sflag, size = 0x4, scoped, tag = 'scoped memory for tpu_custom_call.1']
    #allocation4 [shape = 's32[1]{0}', space=sflag, size = 0x4, scoped, tag = 'scoped memory for tpu_custom_call.1']
    #allocation5 [shape = 'u8[2048]{0}', space=vmem, size = 0x800, scoped, tag = 'input window, operand 1, single buffered']
    #allocation6 [shape = 's32[1]{0}', space=sflag, size = 0x4, scoped, tag = 'scoped memory for tpu_custom_call.1']
    #allocation7 [shape = 'u8[2048]{0}', space=vmem, size = 0x800, scoped, tag = 'input window, operand 2, single buffered']
    #allocation8 [shape = 'u8[81920]{0}', space=vmem, size = 0x14000, scoped, tag = 'output window, operand 0, single buffered']
    %8 = vsyncpa [#allocation3], 0
    %9 = vsyncpa [#allocation6], 0
    %10 = vsyncpa [#allocation4], 0
    // Predicated region
    $region2: #{tpu_custom_call.1} parent=1 // pred_check
      _
    $region3: #{tpu_custom_call.1} parent=1 // pred_check_branch
      %12 = sbr.rel (0) target = $region5
    $region4: #{tpu_custom_call.1} parent=1 // pred_region
      %s14 = ssub.s32 640, 640
      %15 = vsyncadd [#allocation3], %s14
      %s16 = sshll.u32 [#allocation2], 4
      %s17 = int_to_ptr.vmem [resolvable:$true] %s16
      %22 = dma.hbm_to_vmem [thread:$0]  %s0, 640, %s17, [#allocation3], 128, 128, 8
    $region5: #{tpu_custom_call.1} parent=1 // pred_fallthru
      _
    // Predicated region
    $region6: #{tpu_custom_call.1} parent=1 // pred_check
      _
    $region7: #{tpu_custom_call.1} parent=1 // pred_check_branch
      %24 = sbr.rel (0) target = $region9
    $region8: #{tpu_custom_call.1} parent=1 // pred_region
      %s26 = ssub.s32 64, 64
      %27 = vsyncadd [#allocation6], %s26
      %s29 = sshll.u32 [#allocation5], 4
      %s30 = int_to_ptr.vmem [resolvable:$true] %s29
      %32 = dma.hbm_to_vmem [thread:$0]  %s1, 64, %s30, [#allocation6]
    $region9: #{tpu_custom_call.1} parent=1 // pred_fallthru
      _
    // Predicated region
    $region10: #{tpu_custom_call.1} parent=1 // pred_check
      _
    $region11: #{tpu_custom_call.1} parent=1 // pred_check_branch
      %34 = sbr.rel (0) target = $region13
    $region12: #{tpu_custom_call.1} parent=1 // pred_region
      %s36 = ssub.s32 64, 64
      %37 = vsyncadd [#allocation6], %s36
      %s39 = sshll.u32 [#allocation7], 4
      %s40 = int_to_ptr.vmem [resolvable:$true] %s39
      %42 = dma.hbm_to_vmem [thread:$0]  %s2, 64, %s40, [#allocation6]
    $region13: #{tpu_custom_call.1} parent=1 // pred_fallthru
      _
    // Predicated region
    $region14: #{tpu_custom_call.1} parent=1 // pred_check
      _
    $region15: #{tpu_custom_call.1} parent=1 // pred_check_branch
      %44 = sbr.rel (0) target = $region17
    $region16: #{tpu_custom_call.1} parent=1 // pred_region
      %45 = dma.done [#allocation3], 640
    $region17: #{tpu_custom_call.1} parent=1 // pred_fallthru
      _
    // Predicated region
    $region18: #{tpu_custom_call.1} parent=1 // pred_check
      _
    $region19: #{tpu_custom_call.1} parent=1 // pred_check_branch
      %47 = sbr.rel (0) target = $region21
    $region20: #{tpu_custom_call.1} parent=1 // pred_region
      %48 = dma.done [#allocation6], 64
    $region21: #{tpu_custom_call.1} parent=1 // pred_fallthru
      _
    // Predicated region
    $region22: #{tpu_custom_call.1} parent=1 // pred_check
      _
    $region23: #{tpu_custom_call.1} parent=1 // pred_check_branch
      %50 = sbr.rel (0) target = $region25
    $region24: #{tpu_custom_call.1} parent=1 // pred_region
      %51 = dma.done [#allocation6], 64
    $region25: #{tpu_custom_call.1} parent=1 // pred_fallthru
      _
    %v52 = vld [vmem:[#allocation2] sm:$0xff]
    %v53 = vld [vmem:[#allocation2 + $0x8] sm:$0xff]
    %v54 = vld [vmem:[#allocation2 + $0x10] sm:$0xff]
    %v55 = vld [vmem:[#allocation2 + $0x18] sm:$0xff]
    %v56 = vld [vmem:[#allocation2 + $0x20] sm:$0xff]
    %v57 = vld [vmem:[#allocation5] sm:$0xf]
    %v58 = vld [vmem:[#allocation7] sm:$0xf]
    %v59 = vlaneseq
    %v60 = vshrl.u32 %v59, 7
    %v61 = vsub.s32 0, %v60
    %v62 = vrot.slane %v57, %v61
    %v63 = vsub.f32 %v52, %v62
    %v64 = vsub.f32 %v53, %v62
    %v65 = vsub.f32 %v54, %v62
    %v66 = vsub.f32 %v55, %v62
    %v67 = vsub.f32 %v56, %v62
    %v68 = vlaneseq
    %v69 = vshrl.u32 %v68, 7
    %v70 = vsub.s32 0, %v69
    %v71 = vrot.slane %v58, %v70
    %v72 = vmul.f32 %v63, %v71
    %v73 = vmul.f32 %v64, %v71
    %v74 = vmul.f32 %v65, %v71
    %v75 = vmul.f32 %v66, %v71
    %v76 = vmul.f32 %v67, %v71
    %77 = vst [vmem:[#allocation8] sm:$0xff] %v72
    %78 = vst [vmem:[#allocation8 + $0x20] sm:$0xff] %v73
    %79 = vst [vmem:[#allocation8 + $0x40] sm:$0xff] %v74
    %80 = vst [vmem:[#allocation8 + $0x60] sm:$0xff] %v75
    %81 = vst [vmem:[#allocation8 + $0x80] sm:$0xff] %v76
    %v82 = vlaneseq
    %v83 = vshrl.u32 %v82, 7
    %v84 = vsub.s32 1, %v83
    %v85 = vrot.slane %v57, %v84
    %v86 = vsub.f32 %v52, %v85
    %v87 = vsub.f32 %v53, %v85
    %v88 = vsub.f32 %v54, %v85
    %v89 = vsub.f32 %v55, %v85
    %v90 = vsub.f32 %v56, %v85
    %v91 = vlaneseq
    %v92 = vshrl.u32 %v91, 7
    %v93 = vsub.s32 1, %v92
    %v94 = vrot.slane %v58, %v93
    %v95 = vmul.f32 %v86, %v94
    %v96 = vmul.f32 %v87, %v94
    %v97 = vmul.f32 %v88, %v94
    %v98 = vmul.f32 %v89, %v94
    %v99 = vmul.f32 %v90, %v94
    %100 = vst [vmem:[#allocation8 + $0x8] sm:$0xff] %v95
    %101 = vst [vmem:[#allocation8 + $0x28] sm:$0xff] %v96
    %102 = vst [vmem:[#allocation8 + $0x48] sm:$0xff] %v97
    %103 = vst [vmem:[#allocation8 + $0x68] sm:$0xff] %v98
    %104 = vst [vmem:[#allocation8 + $0x88] sm:$0xff] %v99
    %v105 = vlaneseq
    %v106 = vshrl.u32 %v105, 7
    %v107 = vsub.s32 2, %v106
    %v108 = vrot.slane %v57, %v107
    %v109 = vsub.f32 %v52, %v108
    %v110 = vsub.f32 %v53, %v108
    %v111 = vsub.f32 %v54, %v108
    %v112 = vsub.f32 %v55, %v108
    %v113 = vsub.f32 %v56, %v108
    %v114 = vlaneseq
    %v115 = vshrl.u32 %v114, 7
    %v116 = vsub.s32 2, %v115
    %v117 = vrot.slane %v58, %v116
    %v118 = vmul.f32 %v109, %v117
    %v119 = vmul.f32 %v110, %v117
    %v120 = vmul.f32 %v111, %v117
    %v121 = vmul.f32 %v112, %v117
    %v122 = vmul.f32 %v113, %v117
    %123 = vst [vmem:[#allocation8 + $0x10] sm:$0xff] %v118
    %124 = vst [vmem:[#allocation8 + $0x30] sm:$0xff] %v119
    %125 = vst [vmem:[#allocation8 + $0x50] sm:$0xff] %v120
    %126 = vst [vmem:[#allocation8 + $0x70] sm:$0xff] %v121
    %127 = vst [vmem:[#allocation8 + $0x90] sm:$0xff] %v122
    %v128 = vlaneseq
    %v129 = vshrl.u32 %v128, 7
    %v130 = vsub.s32 3, %v129
    %v131 = vrot.slane %v57, %v130
    %v132 = vsub.f32 %v52, %v131
    %v133 = vsub.f32 %v53, %v131
    %v134 = vsub.f32 %v54, %v131
    %v135 = vsub.f32 %v55, %v131
    %v136 = vsub.f32 %v56, %v131
    %v137 = vlaneseq
    %v138 = vshrl.u32 %v137, 7
    %v139 = vsub.s32 3, %v138
    %v140 = vrot.slane %v58, %v139
    %v141 = vmul.f32 %v132, %v140
    %v142 = vmul.f32 %v133, %v140
    %v143 = vmul.f32 %v134, %v140
    %v144 = vmul.f32 %v135, %v140
    %v145 = vmul.f32 %v136, %v140
    %146 = vst [vmem:[#allocation8 + $0x18] sm:$0xff] %v141
    %147 = vst [vmem:[#allocation8 + $0x38] sm:$0xff] %v142
    %148 = vst [vmem:[#allocation8 + $0x58] sm:$0xff] %v143
    %149 = vst [vmem:[#allocation8 + $0x78] sm:$0xff] %v144
    %150 = vst [vmem:[#allocation8 + $0x98] sm:$0xff] %v145
    // Predicated region
    $region26: #{tpu_custom_call.1} parent=1 // pred_check
      _
    $region27: #{tpu_custom_call.1} parent=1 // pred_check_branch
      %152 = sbr.rel (0) target = $region29
    $region28: #{tpu_custom_call.1} parent=1 // pred_region
      %s154 = ssub.s32 2560, 2560
      %155 = vsyncadd [#allocation4], %s154
      %s156 = sshll.u32 [#allocation8], 4
      %s157 = int_to_ptr.vmem [resolvable:$true] %s156
      %162 = dma.vmem_to_hbm [thread:$0]  %s157, 2560, %s3, [#allocation4], 512, 512, 32
    $region29: #{tpu_custom_call.1} parent=1 // pred_fallthru
      _
    // Predicated region
    $region30: #{tpu_custom_call.1} parent=1 // pred_check
      _
    $region31: #{tpu_custom_call.1} parent=1 // pred_check_branch
      %164 = sbr.rel (0) target = $region33
    $region32: #{tpu_custom_call.1} parent=1 // pred_region
      %165 = dma.done [#allocation4], 2560
    $region33: #{tpu_custom_call.1} parent=1 // pred_fallthru
      _
    %166 = vsyncpa [#allocation3], 1
    %167 = vsyncpa [#allocation6], 1
    %168 = vsyncpa [#allocation4], 1

</llo_original>
